<compile_context>
chip_gen: v5e
topology: v5e:2x2
jax: 0.10.0
libtpu: 0.0.40
codegen_flags: <defaults>
</compile_context>

<pallas_src>
import functools

import jax
import jax.numpy as jnp
from jax.experimental import pallas as pl
from jax.experimental.pallas import tpu as pltpu

_SUBLANE = 8
_BF16_SUBLANE = 16


def _round_up(x, m):
    return ((x + m - 1) // m) * m


def _tower_node_kernel(num_hidden_layers, x_ref, *refs):
    """Fused MLP tower for one row-tile of nodes.

    refs layout (per grid step):
      x_ref                         : [TN, in]          (f32, cast to bf16 here)
      refs[2*i], refs[2*i + 1]      : W_i [in_i, out_i] (bf16), b_i [1, out_i] (f32)
      refs[2*H], refs[2*H + 1]      : W_f [h, C]        (bf16), b_f [1, C]     (f32)
      refs[-1]                      : out_ref [TN, C]   (f32)
    """
    out_ref = refs[-1]
    p = refs[:-1]

    # In-kernel bf16 cast of the pipelined f32 x stream (no wrapper-side cast
    # pass; the VPU cast is free under the memory-bound regime).
    h = x_ref[...].astype(jnp.bfloat16)
    for i in range(num_hidden_layers):
        w = p[2 * i][...]
        b = p[2 * i + 1][...]
        # MXU bf16 matmul with f32 accumulation; bias add + ReLU in f32 (VPU).
        h32 = jnp.dot(h, w, preferred_element_type=jnp.float32) + b
        h32 = jnp.maximum(h32, 0.0)
        h = h32.astype(jnp.bfloat16)  # feed next MXU matmul at native bf16 rate
    wf = p[2 * num_hidden_layers][...]
    bf = p[2 * num_hidden_layers + 1][...]
    logit = jnp.dot(h, wf, preferred_element_type=jnp.float32) + bf
    # Only [TN, num_classes] leaves VMEM (no padded class slab).
    out_ref[...] = logit.astype(out_ref.dtype)


def tower_node_forward(x, hidden_params, final_params, *, row_tile=4096):
    """x: [N, 2*hidden_size] f32; hidden_params: list of (W [in,out], b [1,out]);
    final_params: (W [final_hidden, num_classes], b [1, num_classes]).
    Returns f32 logits of shape [N, num_classes]."""
    num_hidden_layers = len(hidden_params)
    wf, bfin = final_params
    num_classes = wf.shape[1]
    N, in_dim = x.shape

    # ---- row tiling over the node dimension ---------------------------------
    # * multiple of 16 (bf16 sublane packing of intermediate activations)
    # * at least 2 grid steps when N allows -> both TensorCores on v7x
    # * never (much) larger than N itself
    half_rows = -(-N // 2)  # ceil(N / 2)
    tn = min(row_tile, max(_BF16_SUBLANE, _round_up(half_rows, _BF16_SUBLANE)),
             _round_up(N, _SUBLANE))
    tn = max(tn, _SUBLANE)
    grid = (pl.cdiv(N, tn),)  # ragged last block handled by Pallas (no jnp.pad)

    # ---- resident bf16 weights, f32 biases (tiny, DMA'd once) ----------------
    flat_params = []
    for w, b in hidden_params:
        flat_params += [w.astype(jnp.bfloat16), b.astype(jnp.float32)]
    flat_params += [wf.astype(jnp.bfloat16), bfin.astype(jnp.float32)]

    # x and output are tiled over rows; the tiny weights/biases are full-array
    # VMEM residents (constant index_map -> no re-DMA across grid steps).
    in_specs = [pl.BlockSpec((tn, in_dim), lambda i: (i, 0))]
    in_specs += [pl.BlockSpec(p.shape, lambda i: (0, 0)) for p in flat_params]
    out_specs = pl.BlockSpec((tn, num_classes), lambda i: (i, 0))

    # Advisory cost estimate: actual kernel traffic (f32 x read, params once,
    # narrow f32 logit write).
    flops = 0
    d = in_dim
    for w, _ in hidden_params:
        flops += 2 * N * d * w.shape[1]
        d = w.shape[1]
    flops += 2 * N * d * num_classes
    bytes_accessed = (
        N * in_dim * 4
        + sum(int(p.size) * p.dtype.itemsize for p in flat_params)
        + N * num_classes * 4
    )

    kernel = functools.partial(_tower_node_kernel, num_hidden_layers)
    out = pl.pallas_call(
        kernel,
        out_shape=jax.ShapeDtypeStruct((N, num_classes), jnp.float32),
        grid=grid,
        in_specs=in_specs,
        out_specs=out_specs,
        compiler_params=pltpu.CompilerParams(
            dimension_semantics=("parallel",),      # megacore shard on v7x
            vmem_limit_bytes=32 * 1024 * 1024,      # explicit: safe on v5e..v7x
        ),
        cost_estimate=pl.CostEstimate(
            flops=int(flops), transcendentals=0, bytes_accessed=int(bytes_accessed)
        ),
    )(x, *flat_params)
    return out


def init_tower_node_params(key, hidden_size, final_hidden_size, num_mlps, num_classes):
    """Deterministic init matching nn.Linear shapes (stored transposed)."""
    last_hidden_size_node = hidden_size * 2
    dims = [last_hidden_size_node] + [final_hidden_size] * num_mlps
    hidden_params = []
    for i in range(num_mlps):
        fan_in, fan_out = dims[i], dims[i + 1]
        key, kw, kb = jax.random.split(key, 3)
        bound = 1.0 / (fan_in ** 0.5)
        w = jax.random.uniform(kw, (fan_in, fan_out), jnp.float32, -bound, bound)
        b = jax.random.uniform(kb, (1, fan_out), jnp.float32, -bound, bound)
        hidden_params.append((w, b))
    key, kw, kb = jax.random.split(key, 3)
    bound = 1.0 / (final_hidden_size ** 0.5)
    wf = jax.random.uniform(kw, (final_hidden_size, num_classes), jnp.float32, -bound, bound)
    bf = jax.random.uniform(kb, (1, num_classes), jnp.float32, -bound, bound)
    return hidden_params, (wf, bf)


def _reference_bf16(x, hidden_params, final_params):
    """Pure-JAX reference with the same bf16-matmul / f32-accumulate numerics."""
    h = x.astype(jnp.bfloat16)
    for w, b in hidden_params:
        h32 = jnp.dot(h, w.astype(jnp.bfloat16), preferred_element_type=jnp.float32) + b
        h32 = jnp.maximum(h32, 0.0)
        h = h32.astype(jnp.bfloat16)
    wf, bf = final_params
    return jnp.dot(h, wf.astype(jnp.bfloat16), preferred_element_type=jnp.float32) + bf


def _reference_f32(x, hidden_params, final_params):
    h = x
    for w, b in hidden_params:
        h = jnp.maximum(h @ w + b, 0.0)
    return h @ final_params[0] + final_params[1]


if __name__ == "__main__":
    # Small config implied by the module's __init__:
    hidden_size = 16          # args.hidden_size   -> input dim = 32
    final_hidden_size = 32    # args.final_hidden_size
    num_mlps = 2              # args.num_mlps
    num_classes = 3           # args.num_classes
    num_nodes = 8             # batch of nodes

    key = jax.random.PRNGKey(0)
    key, kx = jax.random.split(key)
    x = jax.random.normal(kx, (num_nodes, hidden_size * 2), jnp.float32)

    hidden_params, final_params = init_tower_node_params(
        key, hidden_size, final_hidden_size, num_mlps, num_classes)

    # --- run 1: tiny batch, single grid step --------------------------------
    node_logit = tower_node_forward(x, hidden_params, final_params)
    jax.block_until_ready(node_logit)
    assert node_logit.shape == (num_nodes, num_classes)

    ref_bf = _reference_bf16(x, hidden_params, final_params)
    ref_f32 = _reference_f32(x, hidden_params, final_params)
    assert jnp.allclose(node_logit, ref_bf, atol=1e-4, rtol=1e-4)
    assert jnp.allclose(node_logit, ref_f32, atol=5e-2, rtol=5e-2)

    # --- run 2: ragged batch, multiple row tiles (grid + clipped last block) -
    key, kx2 = jax.random.split(key)
    n2 = 300
    x2 = jax.random.normal(kx2, (n2, hidden_size * 2), jnp.float32)
    out2 = tower_node_forward(x2, hidden_params, final_params, row_tile=128)
    jax.block_until_ready(out2)
    assert out2.shape == (n2, num_classes)
    ref2 = _reference_bf16(x2, hidden_params, final_params)
    assert jnp.allclose(out2, ref2, atol=1e-4, rtol=1e-4)

    # --- run 3: default tile rule (>=2 grid steps for v7x megacore) ----------
    out3 = tower_node_forward(x2, hidden_params, final_params)
    jax.block_until_ready(out3)
    assert out3.shape == (n2, num_classes)
    assert jnp.allclose(out3, ref2, atol=1e-4, rtol=1e-4)

    print("KERNEL_OK")
</pallas_src>

<mosaic_0001>
module attributes {stable_mosaic.version = 11 : i64} {
  func.func @_tower_node_kernel(%arg0: i32, %arg1: memref<8x32xf32, #tpu.memory_space<vmem>>, %arg2: memref<32x32xbf16, #tpu.memory_space<vmem>>, %arg3: memref<1x32xf32, #tpu.memory_space<vmem>>, %arg4: memref<32x32xbf16, #tpu.memory_space<vmem>>, %arg5: memref<1x32xf32, #tpu.memory_space<vmem>>, %arg6: memref<32x3xbf16, #tpu.memory_space<vmem>>, %arg7: memref<1x3xf32, #tpu.memory_space<vmem>>, %arg8: memref<8x3xf32, #tpu.memory_space<vmem>>) attributes {dimension_semantics = [#tpu.dimension_semantics<parallel>], iteration_bounds = array<i64: 1>, scalar_prefetch = 0 : i64, scratch_operands = 0 : i64, tpu.core_type = #tpu.core_type<tc>, window_params = [{transform_indices = @transform_0, window_bounds = array<i64: 8, 32>}, {pipeline_mode = #tpu.pipeline_mode<synchronous>, transform_indices = @transform_1, window_bounds = array<i64: 32, 32>}, {pipeline_mode = #tpu.pipeline_mode<synchronous>, transform_indices = @transform_2, window_bounds = array<i64: 1, 32>}, {pipeline_mode = #tpu.pipeline_mode<synchronous>, transform_indices = @transform_3, window_bounds = array<i64: 32, 32>}, {pipeline_mode = #tpu.pipeline_mode<synchronous>, transform_indices = @transform_4, window_bounds = array<i64: 1, 32>}, {pipeline_mode = #tpu.pipeline_mode<synchronous>, transform_indices = @transform_5, window_bounds = array<i64: 32, 3>}, {pipeline_mode = #tpu.pipeline_mode<synchronous>, transform_indices = @transform_6, window_bounds = array<i64: 1, 3>}, {transform_indices = @transform_7, window_bounds = array<i64: 8, 3>}]} {
    %c0 = arith.constant 0 : index
    %c0_0 = arith.constant 0 : index
    %0 = vector.load %arg1[%c0, %c0_0] : memref<8x32xf32, #tpu.memory_space<vmem>>, vector<8x32xf32>
    %1 = arith.truncf %0 : vector<8x32xf32> to vector<8x32xbf16>
    %c0_1 = arith.constant 0 : index
    %c0_2 = arith.constant 0 : index
    %2 = vector.load %arg2[%c0_1, %c0_2] : memref<32x32xbf16, #tpu.memory_space<vmem>>, vector<32x32xbf16>
    %c0_3 = arith.constant 0 : index
    %c0_4 = arith.constant 0 : index
    %3 = vector.load %arg3[%c0_3, %c0_4] : memref<1x32xf32, #tpu.memory_space<vmem>>, vector<1x32xf32>
    %cst = arith.constant dense<0.000000e+00> : vector<8x32xf32>
    %4 = tpu.matmul %1, %2, %cst {dimension_numbers = #tpu.dot_dimension_numbers<[1], [0], [0], [1], [0, 0, 1, 1], [], []>} : vector<8x32xbf16>, vector<32x32xbf16>, vector<8x32xf32> -> vector<8x32xf32>
    %5 = vector.broadcast %3 : vector<1x32xf32> to vector<8x32xf32>
    %6 = arith.addf %4, %5 : vector<8x32xf32>
    %cst_5 = arith.constant 0.000000e+00 : f32
    %7 = vector.broadcast %cst_5 : f32 to vector<8x32xf32>
    %8 = arith.maximumf %6, %7 : vector<8x32xf32>
    %9 = arith.truncf %8 : vector<8x32xf32> to vector<8x32xbf16>
    %c0_6 = arith.constant 0 : index
    %c0_7 = arith.constant 0 : index
    %10 = vector.load %arg4[%c0_6, %c0_7] : memref<32x32xbf16, #tpu.memory_space<vmem>>, vector<32x32xbf16>
    %c0_8 = arith.constant 0 : index
    %c0_9 = arith.constant 0 : index
    %11 = vector.load %arg5[%c0_8, %c0_9] : memref<1x32xf32, #tpu.memory_space<vmem>>, vector<1x32xf32>
    %cst_10 = arith.constant dense<0.000000e+00> : vector<8x32xf32>
    %12 = tpu.matmul %9, %10, %cst_10 {dimension_numbers = #tpu.dot_dimension_numbers<[1], [0], [0], [1], [0, 0, 1, 1], [], []>} : vector<8x32xbf16>, vector<32x32xbf16>, vector<8x32xf32> -> vector<8x32xf32>
    %13 = vector.broadcast %11 : vector<1x32xf32> to vector<8x32xf32>
    %14 = arith.addf %12, %13 : vector<8x32xf32>
    %cst_11 = arith.constant 0.000000e+00 : f32
    %15 = vector.broadcast %cst_11 : f32 to vector<8x32xf32>
    %16 = arith.maximumf %14, %15 : vector<8x32xf32>
    %17 = arith.truncf %16 : vector<8x32xf32> to vector<8x32xbf16>
    %c0_12 = arith.constant 0 : index
    %c0_13 = arith.constant 0 : index
    %18 = vector.load %arg6[%c0_12, %c0_13] : memref<32x3xbf16, #tpu.memory_space<vmem>>, vector<32x3xbf16>
    %c0_14 = arith.constant 0 : index
    %c0_15 = arith.constant 0 : index
    %19 = vector.load %arg7[%c0_14, %c0_15] : memref<1x3xf32, #tpu.memory_space<vmem>>, vector<1x3xf32>
    %cst_16 = arith.constant dense<0.000000e+00> : vector<8x3xf32>
    %20 = tpu.matmul %17, %18, %cst_16 {dimension_numbers = #tpu.dot_dimension_numbers<[1], [0], [0], [1], [0, 0, 1, 1], [], []>} : vector<8x32xbf16>, vector<32x3xbf16>, vector<8x3xf32> -> vector<8x3xf32>
    %21 = vector.broadcast %19 : vector<1x3xf32> to vector<8x3xf32>
    %22 = arith.addf %20, %21 : vector<8x3xf32>
    %c0_17 = arith.constant 0 : index
    %c0_18 = arith.constant 0 : index
    %23 = vector.load %arg8[%c0_17, %c0_18] : memref<8x3xf32, #tpu.memory_space<vmem>>, vector<8x3xf32>
    tpu.vector_store %arg8[%c0_17, %c0_18], %22 {strides = array<i32>} : memref<8x3xf32, #tpu.memory_space<vmem>>, vector<8x3xf32>,
    return
  }
  func.func @transform_0(%arg0: i32) -> (i32, i32) {
    %c0_i32 = arith.constant 0 : i32
    %c0_i32_0 = arith.constant 0 : i32
    return %arg0, %c0_i32 : i32, i32
  }
  func.func @transform_1(%arg0: i32) -> (i32, i32) {
    %c0_i32 = arith.constant 0 : i32
    %c0_i32_0 = arith.constant 0 : i32
    %c0_i32_1 = arith.constant 0 : i32
    return %c0_i32, %c0_i32_0 : i32, i32
  }
  func.func @transform_2(%arg0: i32) -> (i32, i32) {
    %c0_i32 = arith.constant 0 : i32
    %c0_i32_0 = arith.constant 0 : i32
    %c0_i32_1 = arith.constant 0 : i32
    return %c0_i32, %c0_i32_0 : i32, i32
  }
  func.func @transform_3(%arg0: i32) -> (i32, i32) {
    %c0_i32 = arith.constant 0 : i32
    %c0_i32_0 = arith.constant 0 : i32
    %c0_i32_1 = arith.constant 0 : i32
    return %c0_i32, %c0_i32_0 : i32, i32
  }
  func.func @transform_4(%arg0: i32) -> (i32, i32) {
    %c0_i32 = arith.constant 0 : i32
    %c0_i32_0 = arith.constant 0 : i32
    %c0_i32_1 = arith.constant 0 : i32
    return %c0_i32, %c0_i32_0 : i32, i32
  }
  func.func @transform_5(%arg0: i32) -> (i32, i32) {
    %c0_i32 = arith.constant 0 : i32
    %c0_i32_0 = arith.constant 0 : i32
    %c0_i32_1 = arith.constant 0 : i32
    return %c0_i32, %c0_i32_0 : i32, i32
  }
  func.func @transform_6(%arg0: i32) -> (i32, i32) {
    %c0_i32 = arith.constant 0 : i32
    %c0_i32_0 = arith.constant 0 : i32
    %c0_i32_1 = arith.constant 0 : i32
    return %c0_i32, %c0_i32_0 : i32, i32
  }
  func.func @transform_7(%arg0: i32) -> (i32, i32) {
    %c0_i32 = arith.constant 0 : i32
    %c0_i32_0 = arith.constant 0 : i32
    return %arg0, %c0_i32 : i32, i32
  }
}

</mosaic_0001>

<llo_original>
// kernel: tpu_custom_call.1
$region0: #{tpu_custom_call.1}
  #allocation0 [shape = 'u32[]', space=smem, size = 0x4, offset = 0x4, fixed_abs, tag = 'smem constant byte address 0x4 - core index']
  #allocation1 [shape = 'u32[72,128]{1,0:T(1,128)}', space=vmem, size = 0x9000, scoped, tag = 'internal scratch']
  %s0 = inlined_call_operand.hbm [shape: f32[8,32], index: 0, kind: input, shape index: {}]
  %s1 = inlined_call_operand.vmem [shape: bf16[32,32], index: 1, kind: input, shape index: {}]
  %s2 = inlined_call_operand.vmem [shape: f32[1,32], index: 2, kind: input, shape index: {}]
  %s3 = inlined_call_operand.hbm [shape: bf16[32,32], index: 3, kind: input, shape index: {}]
  %s4 = inlined_call_operand.vmem [shape: f32[1,32], index: 4, kind: input, shape index: {}]
  %s5 = inlined_call_operand.vmem [shape: bf16[32,3], index: 5, kind: input, shape index: {}]
  %s6 = inlined_call_operand.vmem [shape: f32[1,3], index: 6, kind: input, shape index: {}]
  %s7 = inlined_call_operand.vmem [shape: f32[8,3], index: 7, kind: output, shape index: {}]
  %s8 = sld [smem:[#allocation0]]
  $region46: #{tpu_custom_call.1} parent=0
    _
  %s10 = ssub.s32 1, %s8
  %s11 = scalar_select 0, %s10, %s8
  $region1: #{tpu_custom_call.1} parent=0
    #allocation2 [shape = 'u8[4096]{0}', space=vmem, size = 0x1000, scoped, tag = 'input window, operand 0, single buffered']
    #allocation3 [shape = 's32[1]{0}', space=sflag, size = 0x4, scoped, tag = 'scoped memory for tpu_custom_call.1']
    #allocation4 [shape = 'u8[8192]{0}', space=vmem, size = 0x2000, scoped, tag = 'input window, operand 3, single buffered']
    #allocation5 [shape = 's32[1]{0}', space=sflag, size = 0x4, scoped, tag = 'scoped memory for tpu_custom_call.1']
    %12 = vsyncpa [#allocation3], 0
    %13 = vsyncpa [#allocation5], 0
    // Predicated region
    $region2: #{tpu_custom_call.1} parent=1 // pred_check
      _
    $region3: #{tpu_custom_call.1} parent=1 // pred_check_branch
      %15 = sbr.rel (0) target = $region5
    $region4: #{tpu_custom_call.1} parent=1 // pred_region
      %17 = vsyncadd [#allocation3], 0
      %s19 = sshll.u32 %s0, 4
      %s20 = int_to_ptr.hbm [resolvable:$true] %s19
      %s21 = sshll.u32 [#allocation2], 4
      %s22 = int_to_ptr.vmem [resolvable:$true] %s21
      %24 = dma.hbm_to_vmem [thread:$0]  %s20, 128, %s22, [#allocation3]
    $region5: #{tpu_custom_call.1} parent=1 // pred_fallthru
      _
    // Predicated region
    $region6: #{tpu_custom_call.1} parent=1 // pred_check
      _
    $region7: #{tpu_custom_call.1} parent=1 // pred_check_branch
      %26 = sbr.rel (0) target = $region9
    $region8: #{tpu_custom_call.1} parent=1 // pred_region
      _
    $region9: #{tpu_custom_call.1} parent=1 // pred_fallthru
      _
    // Predicated region
    $region10: #{tpu_custom_call.1} parent=1 // pred_check
      _
    $region11: #{tpu_custom_call.1} parent=1 // pred_check_branch
      %28 = sbr.rel (0) target = $region13
    $region12: #{tpu_custom_call.1} parent=1 // pred_region
      _
    $region13: #{tpu_custom_call.1} parent=1 // pred_fallthru
      _
    // Predicated region
    $region14: #{tpu_custom_call.1} parent=1 // pred_check
      _
    $region15: #{tpu_custom_call.1} parent=1 // pred_check_branch
      %30 = sbr.rel (0) target = $region17
    $region16: #{tpu_custom_call.1} parent=1 // pred_region
      %32 = vsyncadd [#allocation5], 0
      %s33 = sshll.u32 %s3, 4
      %s34 = int_to_ptr.hbm [resolvable:$true] %s33
      %s35 = sshll.u32 [#allocation4], 4
      %s36 = int_to_ptr.vmem [resolvable:$true] %s35
      %41 = dma.hbm_to_vmem [thread:$0]  %s34, 256, %s36, [#allocation5], 64, 64, 4
    $region17: #{tpu_custom_call.1} parent=1 // pred_fallthru
      _
    // Predicated region
    $region18: #{tpu_custom_call.1} parent=1 // pred_check
      _
    $region19: #{tpu_custom_call.1} parent=1 // pred_check_branch
      %43 = sbr.rel (0) target = $region21
    $region20: #{tpu_custom_call.1} parent=1 // pred_region
      _
    $region21: #{tpu_custom_call.1} parent=1 // pred_fallthru
      _
    // Predicated region
    $region22: #{tpu_custom_call.1} parent=1 // pred_check
      _
    $region23: #{tpu_custom_call.1} parent=1 // pred_check_branch
      %45 = sbr.rel (0) target = $region25
    $region24: #{tpu_custom_call.1} parent=1 // pred_region
      _
    $region25: #{tpu_custom_call.1} parent=1 // pred_fallthru
      _
    // Predicated region
    $region26: #{tpu_custom_call.1} parent=1 // pred_check
      _
    $region27: #{tpu_custom_call.1} parent=1 // pred_check_branch
      %47 = sbr.rel (0) target = $region29
    $region28: #{tpu_custom_call.1} parent=1 // pred_region
      _
    $region29: #{tpu_custom_call.1} parent=1 // pred_fallthru
      _
    // Predicated region
    $region30: #{tpu_custom_call.1} parent=1 // pred_check
      _
    $region31: #{tpu_custom_call.1} parent=1 // pred_check_branch
      %49 = sbr.rel (0) target = $region33
    $region32: #{tpu_custom_call.1} parent=1 // pred_region
      %51 = dma.done [#allocation3], 128
    $region33: #{tpu_custom_call.1} parent=1 // pred_fallthru
      _
    // Predicated region
    $region34: #{tpu_custom_call.1} parent=1 // pred_check
      _
    $region35: #{tpu_custom_call.1} parent=1 // pred_check_branch
      %53 = sbr.rel (0) target = $region37
    $region36: #{tpu_custom_call.1} parent=1 // pred_region
      %55 = dma.done [#allocation5], 256
    $region37: #{tpu_custom_call.1} parent=1 // pred_fallthru
      _
    %v57 = vld [vmem:[#allocation2] sm:$0xff]
    %v58 = vpack.c.bf16 %v57, %v57
    %v59 = vld [vmem:[%s1] sm:$0xf]
    %v60 = vld [vmem:[%s1 + $0x4] sm:$0xf]
    %v61 = vld [vmem:[%s1 + $0x8] sm:$0xf]
    %v62 = vld [vmem:[%s1 + $0xc] sm:$0xf]
    %v63 = vld [vmem:[%s2] sm:$0x1]
    %v65 = vperm.slane %v63, 0
    %v71 = vunpack.c.l.b16 %v59
    %v72 = vunpack.c.l.b16 %v60
    %v73 = vunpack.c.l.b16 %v61
    %v74 = vunpack.c.l.b16 %v62
    %v75 = vpack.c.b16 %v72, %v71
    %v76 = vpack.c.b16 %v74, %v73
    %vm79 = vcmask 261120
    %v81 = vsel %vm79, %v58, 0
    %83 = vmatpush.bf16.msra.mxu0 0
    %84 = vmatpush.bf16.msra.mxu0 0
    %85 = vmatpush.bf16.msra.mxu0 0
    %86 = vmatpush.bf16.msra.mxu0 0
    %87 = vmatpush.bf16.msra.mxu0 0
    %88 = vmatpush.bf16.msra.mxu0 0
    %89 = vmatpush.bf16.msra.mxu0 %v76
    %90 = vmatpush.bf16.msra.mxu0 %v75
    %91 = vmatmul.bf16.gmra.mxu0 %v81
    %v92 = vpop.f32.mrf.mxu0
    %v93 = vadd.f32 %v65, %v92
    %v94 = vpop.f32.mrf.mxu0
    %95 = vdwg.mxu0
    %v96 = vmax.f32 %v93, 0.0
    %v97 = vpack.c.bf16 %v96, %v96
    %v98 = vld [vmem:[#allocation4] sm:$0xf]
    %v99 = vld [vmem:[#allocation4 + $0x4] sm:$0xf]
    %v100 = vld [vmem:[#allocation4 + $0x8] sm:$0xf]
    %v101 = vld [vmem:[#allocation4 + $0xc] sm:$0xf]
    %v102 = vld [vmem:[%s4] sm:$0x1]
    %v104 = vperm.slane %v102, 0
    %v110 = vunpack.c.l.b16 %v98
    %v111 = vunpack.c.l.b16 %v99
    %v112 = vunpack.c.l.b16 %v100
    %v113 = vunpack.c.l.b16 %v101
    %v114 = vpack.c.b16 %v111, %v110
    %v115 = vpack.c.b16 %v113, %v112
    %v119 = vsel %vm79, %v97, 0
    %121 = vmatpush.bf16.msra.mxu0 0
    %122 = vmatpush.bf16.msra.mxu0 0
    %123 = vmatpush.bf16.msra.mxu0 0
    %124 = vmatpush.bf16.msra.mxu0 0
    %125 = vmatpush.bf16.msra.mxu0 0
    %126 = vmatpush.bf16.msra.mxu0 0
    %127 = vmatpush.bf16.msra.mxu0 %v115
    %128 = vmatpush.bf16.msra.mxu0 %v114
    %129 = vmatmul.bf16.gmra.mxu0 %v119
    %v130 = vpop.f32.mrf.mxu0
    %v131 = vadd.f32 %v104, %v130
    %v132 = vpop.f32.mrf.mxu0
    %133 = vdwg.mxu0
    %v134 = vmax.f32 %v131, 0.0
    %v135 = vpack.c.bf16 %v134, %v134
    %v136 = vld [vmem:[%s5] sm:$0xf]
    %v137 = vld [vmem:[%s5 + $0x4] sm:$0xf]
    %v138 = vld [vmem:[%s5 + $0x8] sm:$0xf]
    %v139 = vld [vmem:[%s5 + $0xc] sm:$0xf]
    %v140 = vld [vmem:[%s6] sm:$0x1]
    %v142 = vperm.slane %v140, 0
    %v148 = vunpack.c.l.b16 %v136
    %v149 = vunpack.c.l.b16 %v137
    %v150 = vunpack.c.l.b16 %v138
    %v151 = vunpack.c.l.b16 %v139
    %v152 = vpack.c.b16 %v149, %v148
    %v153 = vpack.c.b16 %v151, %v150
    %v157 = vsel %vm79, %v135, 0
    %159 = vmatpush.bf16.msra.mxu0 0
    %160 = vmatpush.bf16.msra.mxu0 0
    %161 = vmatpush.bf16.msra.mxu0 0
    %162 = vmatpush.bf16.msra.mxu0 0
    %163 = vmatpush.bf16.msra.mxu0 0
    %164 = vmatpush.bf16.msra.mxu0 0
    %165 = vmatpush.bf16.msra.mxu0 %v153
    %166 = vmatpush.bf16.msra.mxu0 %v152
    %167 = vmatmul.bf16.gmra.mxu0 %v157
    %v168 = vpop.f32.mrf.mxu0
    %v169 = vadd.f32 %v142, %v168
    %v170 = vpop.f32.mrf.mxu0
    %171 = vdwg.mxu0
    %vm172 = vcmask 23552
    %173 = vst.msk [vmem:[%s7] sm:$0xff] %vm172, %v169
    // Predicated region
    $region38: #{tpu_custom_call.1} parent=1 // pred_check
      _
    $region39: #{tpu_custom_call.1} parent=1 // pred_check_branch
      %175 = sbr.rel (0) target = $region41
    $region40: #{tpu_custom_call.1} parent=1 // pred_region
      _
    $region41: #{tpu_custom_call.1} parent=1 // pred_fallthru
      _
    // Predicated region
    $region42: #{tpu_custom_call.1} parent=1 // pred_check
      _
    $region43: #{tpu_custom_call.1} parent=1 // pred_check_branch
      %177 = sbr.rel (0) target = $region45
    $region44: #{tpu_custom_call.1} parent=1 // pred_region
      _
    $region45: #{tpu_custom_call.1} parent=1 // pred_fallthru
      _
    %178 = vsyncpa [#allocation3], 1
    %179 = vsyncpa [#allocation5], 1

</llo_original>
